<compile_context>
chip_gen: v6e
topology: v6e:2x2x1
jax: 0.10.0
libtpu: 0.0.40
codegen_flags: <defaults>
</compile_context>

<pallas_src>
import functools

import jax
import jax.numpy as jnp
from jax.experimental import pallas as pl
from jax.experimental.pallas import tpu as pltpu

_TILE_B = 8        # one sublane group per batch tile
_LANES = 128


def _round_up(x, m):
    return (x + m - 1) // m * m


def _pick_tile_v(v_pad, desired):
    """Largest multiple of 128 that divides v_pad and is <= desired."""
    n = v_pad // _LANES
    best = 1
    for d in range(1, n + 1):
        if n % d == 0 and d * _LANES <= desired:
            best = d
    return best * _LANES


# ---------------------------------------------------------------------------
# Fused kernel: (gather+sum) -> Linear (W^T streamed over V tiles) -> log_softmax
# ---------------------------------------------------------------------------
def _cbow_kernel(idx_ref, emb_ref, w_ref, b_ref,        # inputs
                 out_ref,                               # output (resident over V tiles)
                 acc_ref, m_ref, l_ref, slab_ref,       # scratch
                 *, L, n_v):
    bi = pl.program_id(0)            # batch tile ("parallel")
    j = pl.program_id(1)             # V tile     ("arbitrary", streams W^T)
    tile_b, _ = acc_ref.shape
    tile_v = w_ref.shape[1]
    v_rows = emb_ref.shape[0]

    @pl.when(j == 0)
    def _():
        # Embedding gather + context sum as a one-hot-counts matmul: no dynamic VMEM
        # indexing, no per-row DMAs, repeated context words handled for free.
        emb = emb_ref[...]                                             # (Vr, D) f32
        iota_v = jax.lax.broadcasted_iota(jnp.int32, (1, v_rows), 1)
        rows = []
        for b in range(tile_b):
            base = (bi * tile_b + b) * L
            cnt = (iota_v == idx_ref[base]).astype(jnp.float32)
            for i in range(1, L):
                cnt = cnt + (iota_v == idx_ref[base + i]).astype(jnp.float32)
            rows.append(cnt)
        counts = jnp.concatenate(rows, axis=0)                         # (tile_b, Vr)
        acc = jnp.dot(counts, emb, preferred_element_type=jnp.float32)
        acc_ref[...] = acc.astype(jnp.bfloat16)     # cast ONCE; W tiles stay bf16
        m_ref[...] = jnp.full_like(m_ref, jnp.finfo(jnp.float32).min)
        l_ref[...] = jnp.zeros_like(l_ref)

    # Linear on this V tile: bf16 x bf16 -> f32 on the MXU (no upcast of the W stream).
    logits = jnp.dot(acc_ref[...], w_ref[...],
                     preferred_element_type=jnp.float32) + b_ref[...]

    if n_v > 1:
        @pl.when(j < n_v - 1)
        def _():
            slab_ref[j] = logits      # park raw logits in VMEM until lse is known

    # Online max / sum-exp across V tiles (padded lanes carry bias=-1e30 -> exp == 0).
    m_prev = m_ref[...]
    m_new = jnp.maximum(m_prev, jnp.max(logits, axis=-1, keepdims=True))
    l_new = l_ref[...] * jnp.exp(m_prev - m_new) + jnp.sum(
        jnp.exp(logits - m_new), axis=-1, keepdims=True)
    m_ref[...] = m_new
    l_ref[...] = l_new

    @pl.when(j == n_v - 1)
    def _():
        # Fused log_softmax finalize: write `logits - lse` for every V tile straight into
        # the resident output block (single HBM write of the result, no second pass).
        lse = m_new + jnp.log(l_new)                                   # (tile_b, 1)
        for jj in range(n_v - 1):                                      # static unroll
            out_ref[:, jj * tile_v:(jj + 1) * tile_v] = slab_ref[jj] - lse
        out_ref[:, (n_v - 1) * tile_v:n_v * tile_v] = logits - lse


# ---------------------------------------------------------------------------
# Hot path (jitted): one pallas_call over a (batch-tile, V-tile) grid.
# ---------------------------------------------------------------------------
@functools.partial(jax.jit, static_argnames=("L", "tile_v"))
def _cbow_core(idx_flat, emb, w_t, bias, *, L, tile_v):
    b_pad = idx_flat.shape[0] // L
    v_rows, d = emb.shape
    v_pad = w_t.shape[1]
    n_v = v_pad // tile_v
    n_b = b_pad // _TILE_B

    kernel = functools.partial(_cbow_kernel, L=L, n_v=n_v)
    return pl.pallas_call(
        kernel,
        grid=(n_b, n_v),
        in_specs=[
            pl.BlockSpec(memory_space=pltpu.MemorySpace.SMEM),         # flat indices
            pl.BlockSpec((v_rows, d), lambda bi, j: (0, 0)),           # embedding (VMEM resident)
            pl.BlockSpec((d, tile_v), lambda bi, j: (0, j)),           # W^T tile (bf16 stream)
            pl.BlockSpec((1, tile_v), lambda bi, j: (0, j)),           # bias tile
        ],
        out_specs=pl.BlockSpec((_TILE_B, v_pad), lambda bi, j: (bi, 0)),
        out_shape=jax.ShapeDtypeStruct((b_pad, v_pad), jnp.float32),
        scratch_shapes=[
            pltpu.VMEM((_TILE_B, d), jnp.bfloat16),                    # summed context (bf16)
            pltpu.VMEM((_TILE_B, 1), jnp.float32),                     # running max
            pltpu.VMEM((_TILE_B, 1), jnp.float32),                     # running sum-exp
            pltpu.VMEM((max(n_v - 1, 1), _TILE_B, tile_v), jnp.float32),  # logits slab
        ],
        compiler_params=pltpu.CompilerParams(
            dimension_semantics=("parallel", "arbitrary")),
    )(idx_flat, emb, w_t, bias)


# ---------------------------------------------------------------------------
# One-time parameter preparation (transpose/pad/bf16-cast W out of the hot path).
# ---------------------------------------------------------------------------
def prepare_cbow_params(embedding, linear_w, linear_b, tile_v=8192):
    V, D = embedding.shape
    v_rows = _round_up(V, 8)                        # pad emb rows to full sublanes
    v_pad = _round_up(V, _LANES)                    # pad V only to a multiple of 128
    tile_v = _pick_tile_v(v_pad, tile_v)            # tile_v divides v_pad exactly

    emb_pad = jnp.zeros((v_rows, D), jnp.float32)
    emb_pad = emb_pad.at[:V, :].set(jnp.asarray(embedding, jnp.float32))

    w_t = jnp.zeros((D, v_pad), jnp.bfloat16)
    w_t = w_t.at[:, :V].set(jnp.asarray(linear_w, jnp.float32).T.astype(jnp.bfloat16))

    bias = jnp.full((1, v_pad), -1e30, jnp.float32)   # padded lanes vanish in the softmax
    bias = bias.at[0, :V].set(jnp.asarray(linear_b, jnp.float32))

    return dict(emb=emb_pad, w_t=w_t, bias=bias,
                V=V, D=D, V_pad=v_pad, tile_v=tile_v)


def cbow_forward(indices, params):
    """CBOW forward.  (L,) -> (1, V)  (torch semantics), or (B, L) -> (B, V)."""
    idx = jnp.asarray(indices, jnp.int32)
    if idx.ndim == 1:
        idx = idx[None, :]
    B, L = idx.shape
    b_pad = _round_up(B, _TILE_B)
    idx_flat = jnp.zeros((b_pad * L,), jnp.int32).at[:B * L].set(idx.reshape(-1))
    out = _cbow_core(idx_flat, params["emb"], params["w_t"], params["bias"],
                     L=L, tile_v=params["tile_v"])
    return out[:B, :params["V"]]


if __name__ == "__main__":
    raw_text = ('We are about to study the idea of a computational process.\n'
                'Computational processes are abstract beings that inhabit computers.\n'
                'As they evolve, processes manipulate other abstract things called data.\n'
                'The evolution of a process is directed by a pattern of rules\n'
                'called a program. People create programs to direct processes. In effect,\n'
                'we conjure the spirits of the computer with our spells.').split()
    vocab_size = len(set(raw_text))      # V (= 49)
    context = 2
    embedding_dim = 32                   # D
    L = 2 * context

    key = jax.random.PRNGKey(0)
    k_emb, k_w, k_b, k_idx = jax.random.split(key, 4)

    embedding = jax.random.normal(k_emb, (vocab_size, embedding_dim), dtype=jnp.float32)
    bound = 1.0 / (embedding_dim ** 0.5)
    linear_w = jax.random.uniform(k_w, (vocab_size, embedding_dim),
                                  minval=-bound, maxval=bound, dtype=jnp.float32)
    linear_b = jax.random.uniform(k_b, (vocab_size,),
                                  minval=-bound, maxval=bound, dtype=jnp.float32)

    params = prepare_cbow_params(embedding, linear_w, linear_b)

    def ref_logsoftmax(idx2d, emb_f32, w_vd, b_v, quantize):
        sum_em = jnp.sum(emb_f32[idx2d], axis=1)                      # (B, D)
        if quantize:   # mimic the kernel's bf16 context-sum and bf16 W stream
            sum_em = sum_em.astype(jnp.bfloat16).astype(jnp.float32)
            w_vd = w_vd.astype(jnp.bfloat16).astype(jnp.float32)
        return jax.nn.log_softmax(sum_em @ w_vd.T + b_v, axis=-1)

    # --- 1) exact module semantics: single context (L,) -> (1, V) ---
    indices = jax.random.randint(k_idx, (L,), 0, vocab_size, dtype=jnp.int32)
    out = jax.block_until_ready(cbow_forward(indices, params))
    assert out.shape == (1, vocab_size)
    assert jnp.allclose(out, ref_logsoftmax(indices[None, :], embedding, linear_w,
                                            linear_b, True), atol=2e-2), "bf16-ref mismatch"
    assert jnp.allclose(out, ref_logsoftmax(indices[None, :], embedding, linear_w,
                                            linear_b, False), atol=6e-2), "f32-ref mismatch"

    # --- 2) batched contexts, B_pad = 16 exercises the parallel batch-tile axis ---
    bidx = jax.random.randint(jax.random.PRNGKey(1), (10, L), 0, vocab_size, dtype=jnp.int32)
    bout = jax.block_until_ready(cbow_forward(bidx, params))
    assert bout.shape == (10, vocab_size)
    assert jnp.allclose(bout, ref_logsoftmax(bidx, embedding, linear_w, linear_b, True),
                        atol=2e-2), "batched mismatch"

    # --- 3) multi V-tile streaming path (n_v > 1, fused online log-softmax) ---
    V2 = 300
    ka, kb_, kc, kd = jax.random.split(jax.random.PRNGKey(2), 4)
    emb2 = jax.random.normal(ka, (V2, embedding_dim), dtype=jnp.float32)
    w2 = jax.random.uniform(kb_, (V2, embedding_dim), minval=-bound, maxval=bound,
                            dtype=jnp.float32)
    b2 = jax.random.uniform(kc, (V2,), minval=-bound, maxval=bound, dtype=jnp.float32)
    params2 = prepare_cbow_params(emb2, w2, b2, tile_v=128)   # V_pad=384 -> 3 V tiles
    idx2 = jax.random.randint(kd, (4, L), 0, V2, dtype=jnp.int32)
    out2 = jax.block_until_ready(cbow_forward(idx2, params2))
    assert out2.shape == (4, V2)
    assert jnp.allclose(out2, ref_logsoftmax(idx2, emb2, w2, b2, True),
                        atol=2e-2), "multi-tile mismatch"

    print("KERNEL_OK")
</pallas_src>

<mosaic_0001>
module attributes {stable_mosaic.version = 11 : i64} {
  func.func @_cbow_kernel(%arg0: i32, %arg1: i32, %arg2: memref<32xi32, #tpu.memory_space<smem>>, %arg3: memref<56x32xf32, #tpu.memory_space<vmem>>, %arg4: memref<32x128xbf16, #tpu.memory_space<vmem>>, %arg5: memref<1x128xf32, #tpu.memory_space<vmem>>, %arg6: memref<8x128xf32, #tpu.memory_space<vmem>>, %arg7: memref<8x32xbf16, #tpu.memory_space<vmem>>, %arg8: memref<8x1xf32, #tpu.memory_space<vmem>>, %arg9: memref<8x1xf32, #tpu.memory_space<vmem>>, %arg10: memref<1x8x128xf32, #tpu.memory_space<vmem>>) attributes {dimension_semantics = [#tpu.dimension_semantics<parallel>, #tpu.dimension_semantics<arbitrary>], iteration_bounds = array<i64: 1, 1>, scalar_prefetch = 0 : i64, scratch_operands = 4 : i64, tpu.core_type = #tpu.core_type<tc>, window_params = [{transform_indices = @transform_0, window_bounds = array<i64: 32>}, {pipeline_mode = #tpu.pipeline_mode<synchronous>, transform_indices = @transform_1, window_bounds = array<i64: 56, 32>}, {transform_indices = @transform_2, window_bounds = array<i64: 32, 128>}, {transform_indices = @transform_3, window_bounds = array<i64: 1, 128>}, {transform_indices = @transform_4, window_bounds = array<i64: 8, 128>}]} {
    %c0_i32 = arith.constant 0 : i32
    %0 = arith.cmpi eq, %arg1, %c0_i32 : i32
    %1 = arith.extui %0 : i1 to i32
    %c0_i32_0 = arith.constant 0 : i32
    %2 = arith.cmpi ne, %1, %c0_i32_0 : i32
    scf.if %2 {
      %c0_18 = arith.constant 0 : index
      %c0_19 = arith.constant 0 : index
      %28 = vector.load %arg3[%c0_18, %c0_19] : memref<56x32xf32, #tpu.memory_space<vmem>>, vector<56x32xf32>
      %29 = tpu.iota {dimensions = array<i32: 1>} : vector<1x56xi32>
      %c8_i32 = arith.constant 8 : i32
      %30 = arith.muli %arg0, %c8_i32 : i32
      %c0_i32_20 = arith.constant 0 : i32
      %31 = arith.addi %30, %c0_i32_20 : i32
      %c4_i32 = arith.constant 4 : i32
      %32 = arith.muli %31, %c4_i32 : i32
      %33 = arith.index_cast %32 : i32 to index
      %34 = memref.load %arg2[%33] : memref<32xi32, #tpu.memory_space<smem>>
      %35 = vector.broadcast %34 : i32 to vector<1x56xi32>
      %36 = arith.cmpi eq, %29, %35 : vector<1x56xi32>
      %37 = arith.extui %36 : vector<1x56xi1> to vector<1x56xi32>
      %38 = arith.sitofp %37 : vector<1x56xi32> to vector<1x56xf32>
      %c1_i32 = arith.constant 1 : i32
      %39 = arith.addi %32, %c1_i32 : i32
      %40 = arith.index_cast %39 : i32 to index
      %41 = memref.load %arg2[%40] : memref<32xi32, #tpu.memory_space<smem>>
      %42 = vector.broadcast %41 : i32 to vector<1x56xi32>
      %43 = arith.cmpi eq, %29, %42 : vector<1x56xi32>
      %44 = arith.extui %43 : vector<1x56xi1> to vector<1x56xi32>
      %45 = arith.sitofp %44 : vector<1x56xi32> to vector<1x56xf32>
      %46 = arith.addf %38, %45 : vector<1x56xf32>
      %c2_i32 = arith.constant 2 : i32
      %47 = arith.addi %32, %c2_i32 : i32
      %48 = arith.index_cast %47 : i32 to index
      %49 = memref.load %arg2[%48] : memref<32xi32, #tpu.memory_space<smem>>
      %50 = vector.broadcast %49 : i32 to vector<1x56xi32>
      %51 = arith.cmpi eq, %29, %50 : vector<1x56xi32>
      %52 = arith.extui %51 : vector<1x56xi1> to vector<1x56xi32>
      %53 = arith.sitofp %52 : vector<1x56xi32> to vector<1x56xf32>
      %54 = arith.addf %46, %53 : vector<1x56xf32>
      %c3_i32 = arith.constant 3 : i32
      %55 = arith.addi %32, %c3_i32 : i32
      %56 = arith.index_cast %55 : i32 to index
      %57 = memref.load %arg2[%56] : memref<32xi32, #tpu.memory_space<smem>>
      %58 = vector.broadcast %57 : i32 to vector<1x56xi32>
      %59 = arith.cmpi eq, %29, %58 : vector<1x56xi32>
      %60 = arith.extui %59 : vector<1x56xi1> to vector<1x56xi32>
      %61 = arith.sitofp %60 : vector<1x56xi32> to vector<1x56xf32>
      %62 = arith.addf %54, %61 : vector<1x56xf32>
      %c8_i32_21 = arith.constant 8 : i32
      %63 = arith.muli %arg0, %c8_i32_21 : i32
      %c1_i32_22 = arith.constant 1 : i32
      %64 = arith.addi %63, %c1_i32_22 : i32
      %c4_i32_23 = arith.constant 4 : i32
      %65 = arith.muli %64, %c4_i32_23 : i32
      %66 = arith.index_cast %65 : i32 to index
      %67 = memref.load %arg2[%66] : memref<32xi32, #tpu.memory_space<smem>>
      %68 = vector.broadcast %67 : i32 to vector<1x56xi32>
      %69 = arith.cmpi eq, %29, %68 : vector<1x56xi32>
      %70 = arith.extui %69 : vector<1x56xi1> to vector<1x56xi32>
      %71 = arith.sitofp %70 : vector<1x56xi32> to vector<1x56xf32>
      %c1_i32_24 = arith.constant 1 : i32
      %72 = arith.addi %65, %c1_i32_24 : i32
      %73 = arith.index_cast %72 : i32 to index
      %74 = memref.load %arg2[%73] : memref<32xi32, #tpu.memory_space<smem>>
      %75 = vector.broadcast %74 : i32 to vector<1x56xi32>
      %76 = arith.cmpi eq, %29, %75 : vector<1x56xi32>
      %77 = arith.extui %76 : vector<1x56xi1> to vector<1x56xi32>
      %78 = arith.sitofp %77 : vector<1x56xi32> to vector<1x56xf32>
      %79 = arith.addf %71, %78 : vector<1x56xf32>
      %c2_i32_25 = arith.constant 2 : i32
      %80 = arith.addi %65, %c2_i32_25 : i32
      %81 = arith.index_cast %80 : i32 to index
      %82 = memref.load %arg2[%81] : memref<32xi32, #tpu.memory_space<smem>>
      %83 = vector.broadcast %82 : i32 to vector<1x56xi32>
      %84 = arith.cmpi eq, %29, %83 : vector<1x56xi32>
      %85 = arith.extui %84 : vector<1x56xi1> to vector<1x56xi32>
      %86 = arith.sitofp %85 : vector<1x56xi32> to vector<1x56xf32>
      %87 = arith.addf %79, %86 : vector<1x56xf32>
      %c3_i32_26 = arith.constant 3 : i32
      %88 = arith.addi %65, %c3_i32_26 : i32
      %89 = arith.index_cast %88 : i32 to index
      %90 = memref.load %arg2[%89] : memref<32xi32, #tpu.memory_space<smem>>
      %91 = vector.broadcast %90 : i32 to vector<1x56xi32>
      %92 = arith.cmpi eq, %29, %91 : vector<1x56xi32>
      %93 = arith.extui %92 : vector<1x56xi1> to vector<1x56xi32>
      %94 = arith.sitofp %93 : vector<1x56xi32> to vector<1x56xf32>
      %95 = arith.addf %87, %94 : vector<1x56xf32>
      %c8_i32_27 = arith.constant 8 : i32
      %96 = arith.muli %arg0, %c8_i32_27 : i32
      %c2_i32_28 = arith.constant 2 : i32
      %97 = arith.addi %96, %c2_i32_28 : i32
      %c4_i32_29 = arith.constant 4 : i32
      %98 = arith.muli %97, %c4_i32_29 : i32
      %99 = arith.index_cast %98 : i32 to index
      %100 = memref.load %arg2[%99] : memref<32xi32, #tpu.memory_space<smem>>
      %101 = vector.broadcast %100 : i32 to vector<1x56xi32>
      %102 = arith.cmpi eq, %29, %101 : vector<1x56xi32>
      %103 = arith.extui %102 : vector<1x56xi1> to vector<1x56xi32>
      %104 = arith.sitofp %103 : vector<1x56xi32> to vector<1x56xf32>
      %c1_i32_30 = arith.constant 1 : i32
      %105 = arith.addi %98, %c1_i32_30 : i32
      %106 = arith.index_cast %105 : i32 to index
      %107 = memref.load %arg2[%106] : memref<32xi32, #tpu.memory_space<smem>>
      %108 = vector.broadcast %107 : i32 to vector<1x56xi32>
      %109 = arith.cmpi eq, %29, %108 : vector<1x56xi32>
      %110 = arith.extui %109 : vector<1x56xi1> to vector<1x56xi32>
      %111 = arith.sitofp %110 : vector<1x56xi32> to vector<1x56xf32>
      %112 = arith.addf %104, %111 : vector<1x56xf32>
      %c2_i32_31 = arith.constant 2 : i32
      %113 = arith.addi %98, %c2_i32_31 : i32
      %114 = arith.index_cast %113 : i32 to index
      %115 = memref.load %arg2[%114] : memref<32xi32, #tpu.memory_space<smem>>
      %116 = vector.broadcast %115 : i32 to vector<1x56xi32>
      %117 = arith.cmpi eq, %29, %116 : vector<1x56xi32>
      %118 = arith.extui %117 : vector<1x56xi1> to vector<1x56xi32>
      %119 = arith.sitofp %118 : vector<1x56xi32> to vector<1x56xf32>
      %120 = arith.addf %112, %119 : vector<1x56xf32>
      %c3_i32_32 = arith.constant 3 : i32
      %121 = arith.addi %98, %c3_i32_32 : i32
      %122 = arith.index_cast %121 : i32 to index
      %123 = memref.load %arg2[%122] : memref<32xi32, #tpu.memory_space<smem>>
      %124 = vector.broadcast %123 : i32 to vector<1x56xi32>
      %125 = arith.cmpi eq, %29, %124 : vector<1x56xi32>
      %126 = arith.extui %125 : vector<1x56xi1> to vector<1x56xi32>
      %127 = arith.sitofp %126 : vector<1x56xi32> to vector<1x56xf32>
      %128 = arith.addf %120, %127 : vector<1x56xf32>
      %c8_i32_33 = arith.constant 8 : i32
      %129 = arith.muli %arg0, %c8_i32_33 : i32
      %c3_i32_34 = arith.constant 3 : i32
      %130 = arith.addi %129, %c3_i32_34 : i32
      %c4_i32_35 = arith.constant 4 : i32
      %131 = arith.muli %130, %c4_i32_35 : i32
      %132 = arith.index_cast %131 : i32 to index
      %133 = memref.load %arg2[%132] : memref<32xi32, #tpu.memory_space<smem>>
      %134 = vector.broadcast %133 : i32 to vector<1x56xi32>
      %135 = arith.cmpi eq, %29, %134 : vector<1x56xi32>
      %136 = arith.extui %135 : vector<1x56xi1> to vector<1x56xi32>
      %137 = arith.sitofp %136 : vector<1x56xi32> to vector<1x56xf32>
      %c1_i32_36 = arith.constant 1 : i32
      %138 = arith.addi %131, %c1_i32_36 : i32
      %139 = arith.index_cast %138 : i32 to index
      %140 = memref.load %arg2[%139] : memref<32xi32, #tpu.memory_space<smem>>
      %141 = vector.broadcast %140 : i32 to vector<1x56xi32>
      %142 = arith.cmpi eq, %29, %141 : vector<1x56xi32>
      %143 = arith.extui %142 : vector<1x56xi1> to vector<1x56xi32>
      %144 = arith.sitofp %143 : vector<1x56xi32> to vector<1x56xf32>
      %145 = arith.addf %137, %144 : vector<1x56xf32>
      %c2_i32_37 = arith.constant 2 : i32
      %146 = arith.addi %131, %c2_i32_37 : i32
      %147 = arith.index_cast %146 : i32 to index
      %148 = memref.load %arg2[%147] : memref<32xi32, #tpu.memory_space<smem>>
      %149 = vector.broadcast %148 : i32 to vector<1x56xi32>
      %150 = arith.cmpi eq, %29, %149 : vector<1x56xi32>
      %151 = arith.extui %150 : vector<1x56xi1> to vector<1x56xi32>
      %152 = arith.sitofp %151 : vector<1x56xi32> to vector<1x56xf32>
      %153 = arith.addf %145, %152 : vector<1x56xf32>
      %c3_i32_38 = arith.constant 3 : i32
      %154 = arith.addi %131, %c3_i32_38 : i32
      %155 = arith.index_cast %154 : i32 to index
      %156 = memref.load %arg2[%155] : memref<32xi32, #tpu.memory_space<smem>>
      %157 = vector.broadcast %156 : i32 to vector<1x56xi32>
      %158 = arith.cmpi eq, %29, %157 : vector<1x56xi32>
      %159 = arith.extui %158 : vector<1x56xi1> to vector<1x56xi32>
      %160 = arith.sitofp %159 : vector<1x56xi32> to vector<1x56xf32>
      %161 = arith.addf %153, %160 : vector<1x56xf32>
      %c8_i32_39 = arith.constant 8 : i32
      %162 = arith.muli %arg0, %c8_i32_39 : i32
      %c4_i32_40 = arith.constant 4 : i32
      %163 = arith.addi %162, %c4_i32_40 : i32
      %c4_i32_41 = arith.constant 4 : i32
      %164 = arith.muli %163, %c4_i32_41 : i32
      %165 = arith.index_cast %164 : i32 to index
      %166 = memref.load %arg2[%165] : memref<32xi32, #tpu.memory_space<smem>>
      %167 = vector.broadcast %166 : i32 to vector<1x56xi32>
      %168 = arith.cmpi eq, %29, %167 : vector<1x56xi32>
      %169 = arith.extui %168 : vector<1x56xi1> to vector<1x56xi32>
      %170 = arith.sitofp %169 : vector<1x56xi32> to vector<1x56xf32>
      %c1_i32_42 = arith.constant 1 : i32
      %171 = arith.addi %164, %c1_i32_42 : i32
      %172 = arith.index_cast %171 : i32 to index
      %173 = memref.load %arg2[%172] : memref<32xi32, #tpu.memory_space<smem>>
      %174 = vector.broadcast %173 : i32 to vector<1x56xi32>
      %175 = arith.cmpi eq, %29, %174 : vector<1x56xi32>
      %176 = arith.extui %175 : vector<1x56xi1> to vector<1x56xi32>
      %177 = arith.sitofp %176 : vector<1x56xi32> to vector<1x56xf32>
      %178 = arith.addf %170, %177 : vector<1x56xf32>
      %c2_i32_43 = arith.constant 2 : i32
      %179 = arith.addi %164, %c2_i32_43 : i32
      %180 = arith.index_cast %179 : i32 to index
      %181 = memref.load %arg2[%180] : memref<32xi32, #tpu.memory_space<smem>>
      %182 = vector.broadcast %181 : i32 to vector<1x56xi32>
      %183 = arith.cmpi eq, %29, %182 : vector<1x56xi32>
      %184 = arith.extui %183 : vector<1x56xi1> to vector<1x56xi32>
      %185 = arith.sitofp %184 : vector<1x56xi32> to vector<1x56xf32>
      %186 = arith.addf %178, %185 : vector<1x56xf32>
      %c3_i32_44 = arith.constant 3 : i32
      %187 = arith.addi %164, %c3_i32_44 : i32
      %188 = arith.index_cast %187 : i32 to index
      %189 = memref.load %arg2[%188] : memref<32xi32, #tpu.memory_space<smem>>
      %190 = vector.broadcast %189 : i32 to vector<1x56xi32>
      %191 = arith.cmpi eq, %29, %190 : vector<1x56xi32>
      %192 = arith.extui %191 : vector<1x56xi1> to vector<1x56xi32>
      %193 = arith.sitofp %192 : vector<1x56xi32> to vector<1x56xf32>
      %194 = arith.addf %186, %193 : vector<1x56xf32>
      %c8_i32_45 = arith.constant 8 : i32
      %195 = arith.muli %arg0, %c8_i32_45 : i32
      %c5_i32 = arith.constant 5 : i32
      %196 = arith.addi %195, %c5_i32 : i32
      %c4_i32_46 = arith.constant 4 : i32
      %197 = arith.muli %196, %c4_i32_46 : i32
      %198 = arith.index_cast %197 : i32 to index
      %199 = memref.load %arg2[%198] : memref<32xi32, #tpu.memory_space<smem>>
      %200 = vector.broadcast %199 : i32 to vector<1x56xi32>
      %201 = arith.cmpi eq, %29, %200 : vector<1x56xi32>
      %202 = arith.extui %201 : vector<1x56xi1> to vector<1x56xi32>
      %203 = arith.sitofp %202 : vector<1x56xi32> to vector<1x56xf32>
      %c1_i32_47 = arith.constant 1 : i32
      %204 = arith.addi %197, %c1_i32_47 : i32
      %205 = arith.index_cast %204 : i32 to index
      %206 = memref.load %arg2[%205] : memref<32xi32, #tpu.memory_space<smem>>
      %207 = vector.broadcast %206 : i32 to vector<1x56xi32>
      %208 = arith.cmpi eq, %29, %207 : vector<1x56xi32>
      %209 = arith.extui %208 : vector<1x56xi1> to vector<1x56xi32>
      %210 = arith.sitofp %209 : vector<1x56xi32> to vector<1x56xf32>
      %211 = arith.addf %203, %210 : vector<1x56xf32>
      %c2_i32_48 = arith.constant 2 : i32
      %212 = arith.addi %197, %c2_i32_48 : i32
      %213 = arith.index_cast %212 : i32 to index
      %214 = memref.load %arg2[%213] : memref<32xi32, #tpu.memory_space<smem>>
      %215 = vector.broadcast %214 : i32 to vector<1x56xi32>
      %216 = arith.cmpi eq, %29, %215 : vector<1x56xi32>
      %217 = arith.extui %216 : vector<1x56xi1> to vector<1x56xi32>
      %218 = arith.sitofp %217 : vector<1x56xi32> to vector<1x56xf32>
      %219 = arith.addf %211, %218 : vector<1x56xf32>
      %c3_i32_49 = arith.constant 3 : i32
      %220 = arith.addi %197, %c3_i32_49 : i32
      %221 = arith.index_cast %220 : i32 to index
      %222 = memref.load %arg2[%221] : memref<32xi32, #tpu.memory_space<smem>>
      %223 = vector.broadcast %222 : i32 to vector<1x56xi32>
      %224 = arith.cmpi eq, %29, %223 : vector<1x56xi32>
      %225 = arith.extui %224 : vector<1x56xi1> to vector<1x56xi32>
      %226 = arith.sitofp %225 : vector<1x56xi32> to vector<1x56xf32>
      %227 = arith.addf %219, %226 : vector<1x56xf32>
      %c8_i32_50 = arith.constant 8 : i32
      %228 = arith.muli %arg0, %c8_i32_50 : i32
      %c6_i32 = arith.constant 6 : i32
      %229 = arith.addi %228, %c6_i32 : i32
      %c4_i32_51 = arith.constant 4 : i32
      %230 = arith.muli %229, %c4_i32_51 : i32
      %231 = arith.index_cast %230 : i32 to index
      %232 = memref.load %arg2[%231] : memref<32xi32, #tpu.memory_space<smem>>
      %233 = vector.broadcast %232 : i32 to vector<1x56xi32>
      %234 = arith.cmpi eq, %29, %233 : vector<1x56xi32>
      %235 = arith.extui %234 : vector<1x56xi1> to vector<1x56xi32>
      %236 = arith.sitofp %235 : vector<1x56xi32> to vector<1x56xf32>
      %c1_i32_52 = arith.constant 1 : i32
      %237 = arith.addi %230, %c1_i32_52 : i32
      %238 = arith.index_cast %237 : i32 to index
      %239 = memref.load %arg2[%238] : memref<32xi32, #tpu.memory_space<smem>>
      %240 = vector.broadcast %239 : i32 to vector<1x56xi32>
      %241 = arith.cmpi eq, %29, %240 : vector<1x56xi32>
      %242 = arith.extui %241 : vector<1x56xi1> to vector<1x56xi32>
      %243 = arith.sitofp %242 : vector<1x56xi32> to vector<1x56xf32>
      %244 = arith.addf %236, %243 : vector<1x56xf32>
      %c2_i32_53 = arith.constant 2 : i32
      %245 = arith.addi %230, %c2_i32_53 : i32
      %246 = arith.index_cast %245 : i32 to index
      %247 = memref.load %arg2[%246] : memref<32xi32, #tpu.memory_space<smem>>
      %248 = vector.broadcast %247 : i32 to vector<1x56xi32>
      %249 = arith.cmpi eq, %29, %248 : vector<1x56xi32>
      %250 = arith.extui %249 : vector<1x56xi1> to vector<1x56xi32>
      %251 = arith.sitofp %250 : vector<1x56xi32> to vector<1x56xf32>
      %252 = arith.addf %244, %251 : vector<1x56xf32>
      %c3_i32_54 = arith.constant 3 : i32
      %253 = arith.addi %230, %c3_i32_54 : i32
      %254 = arith.index_cast %253 : i32 to index
      %255 = memref.load %arg2[%254] : memref<32xi32, #tpu.memory_space<smem>>
      %256 = vector.broadcast %255 : i32 to vector<1x56xi32>
      %257 = arith.cmpi eq, %29, %256 : vector<1x56xi32>
      %258 = arith.extui %257 : vector<1x56xi1> to vector<1x56xi32>
      %259 = arith.sitofp %258 : vector<1x56xi32> to vector<1x56xf32>
      %260 = arith.addf %252, %259 : vector<1x56xf32>
      %c8_i32_55 = arith.constant 8 : i32
      %261 = arith.muli %arg0, %c8_i32_55 : i32
      %c7_i32 = arith.constant 7 : i32
      %262 = arith.addi %261, %c7_i32 : i32
      %c4_i32_56 = arith.constant 4 : i32
      %263 = arith.muli %262, %c4_i32_56 : i32
      %264 = arith.index_cast %263 : i32 to index
      %265 = memref.load %arg2[%264] : memref<32xi32, #tpu.memory_space<smem>>
      %266 = vector.broadcast %265 : i32 to vector<1x56xi32>
      %267 = arith.cmpi eq, %29, %266 : vector<1x56xi32>
      %268 = arith.extui %267 : vector<1x56xi1> to vector<1x56xi32>
      %269 = arith.sitofp %268 : vector<1x56xi32> to vector<1x56xf32>
      %c1_i32_57 = arith.constant 1 : i32
      %270 = arith.addi %263, %c1_i32_57 : i32
      %271 = arith.index_cast %270 : i32 to index
      %272 = memref.load %arg2[%271] : memref<32xi32, #tpu.memory_space<smem>>
      %273 = vector.broadcast %272 : i32 to vector<1x56xi32>
      %274 = arith.cmpi eq, %29, %273 : vector<1x56xi32>
      %275 = arith.extui %274 : vector<1x56xi1> to vector<1x56xi32>
      %276 = arith.sitofp %275 : vector<1x56xi32> to vector<1x56xf32>
      %277 = arith.addf %269, %276 : vector<1x56xf32>
      %c2_i32_58 = arith.constant 2 : i32
      %278 = arith.addi %263, %c2_i32_58 : i32
      %279 = arith.index_cast %278 : i32 to index
      %280 = memref.load %arg2[%279] : memref<32xi32, #tpu.memory_space<smem>>
      %281 = vector.broadcast %280 : i32 to vector<1x56xi32>
      %282 = arith.cmpi eq, %29, %281 : vector<1x56xi32>
      %283 = arith.extui %282 : vector<1x56xi1> to vector<1x56xi32>
      %284 = arith.sitofp %283 : vector<1x56xi32> to vector<1x56xf32>
      %285 = arith.addf %277, %284 : vector<1x56xf32>
      %c3_i32_59 = arith.constant 3 : i32
      %286 = arith.addi %263, %c3_i32_59 : i32
      %287 = arith.index_cast %286 : i32 to index
      %288 = memref.load %arg2[%287] : memref<32xi32, #tpu.memory_space<smem>>
      %289 = vector.broadcast %288 : i32 to vector<1x56xi32>
      %290 = arith.cmpi eq, %29, %289 : vector<1x56xi32>
      %291 = arith.extui %290 : vector<1x56xi1> to vector<1x56xi32>
      %292 = arith.sitofp %291 : vector<1x56xi32> to vector<1x56xf32>
      %293 = arith.addf %285, %292 : vector<1x56xf32>
      %294 = tpu.concatenate %62, %95, %128, %161, %194, %227, %260, %293 in 0 : vector<1x56xf32>, vector<1x56xf32>, vector<1x56xf32>, vector<1x56xf32>, vector<1x56xf32>, vector<1x56xf32>, vector<1x56xf32>, vector<1x56xf32> -> vector<8x56xf32>
      %cst_60 = arith.constant dense<0.000000e+00> : vector<8x32xf32>
      %295 = tpu.matmul %294, %28, %cst_60 {dimension_numbers = #tpu.dot_dimension_numbers<[1], [0], [0], [1], [0, 0, 1, 1], [], []>} : vector<8x56xf32>, vector<56x32xf32>, vector<8x32xf32> -> vector<8x32xf32>
      %296 = arith.truncf %295 : vector<8x32xf32> to vector<8x32xbf16>
      %c0_61 = arith.constant 0 : index
      %c0_62 = arith.constant 0 : index
      %297 = vector.load %arg7[%c0_61, %c0_62] : memref<8x32xbf16, #tpu.memory_space<vmem>>, vector<8x32xbf16>
      tpu.vector_store %arg7[%c0_61, %c0_62], %296 {strides = array<i32>} : memref<8x32xbf16, #tpu.memory_space<vmem>>, vector<8x32xbf16>,
      %cst_63 = arith.constant -3.40282347E+38 : f32
      %298 = vector.broadcast %cst_63 : f32 to vector<8x1xf32>
      %c0_64 = arith.constant 0 : index
      %c0_65 = arith.constant 0 : index
      %299 = vector.load %arg8[%c0_64, %c0_65] : memref<8x1xf32, #tpu.memory_space<vmem>>, vector<8x1xf32>
      tpu.vector_store %arg8[%c0_64, %c0_65], %298 {strides = array<i32>} : memref<8x1xf32, #tpu.memory_space<vmem>>, vector<8x1xf32>,
      %cst_66 = arith.constant 0.000000e+00 : f32
      %300 = vector.broadcast %cst_66 : f32 to vector<8x1xf32>
      %c0_67 = arith.constant 0 : index
      %c0_68 = arith.constant 0 : index
      %301 = vector.load %arg9[%c0_67, %c0_68] : memref<8x1xf32, #tpu.memory_space<vmem>>, vector<8x1xf32>
      tpu.vector_store %arg9[%c0_67, %c0_68], %300 {strides = array<i32>} : memref<8x1xf32, #tpu.memory_space<vmem>>, vector<8x1xf32>,
    } else {
    }
    %c0 = arith.constant 0 : index
    %c0_1 = arith.constant 0 : index
    %3 = vector.load %arg7[%c0, %c0_1] : memref<8x32xbf16, #tpu.memory_space<vmem>>, vector<8x32xbf16>
    %c0_2 = arith.constant 0 : index
    %c0_3 = arith.constant 0 : index
    %4 = vector.load %arg4[%c0_2, %c0_3] : memref<32x128xbf16, #tpu.memory_space<vmem>>, vector<32x128xbf16>
    %cst = arith.constant dense<0.000000e+00> : vector<8x128xf32>
    %5 = tpu.matmul %3, %4, %cst {dimension_numbers = #tpu.dot_dimension_numbers<[1], [0], [0], [1], [0, 0, 1, 1], [], []>} : vector<8x32xbf16>, vector<32x128xbf16>, vector<8x128xf32> -> vector<8x128xf32>
    %c0_4 = arith.constant 0 : index
    %c0_5 = arith.constant 0 : index
    %6 = vector.load %arg5[%c0_4, %c0_5] : memref<1x128xf32, #tpu.memory_space<vmem>>, vector<1x128xf32>
    %7 = vector.broadcast %6 : vector<1x128xf32> to vector<8x128xf32>
    %8 = arith.addf %5, %7 : vector<8x128xf32>
    %c0_6 = arith.constant 0 : index
    %c0_7 = arith.constant 0 : index
    %9 = vector.load %arg8[%c0_6, %c0_7] : memref<8x1xf32, #tpu.memory_space<vmem>>, vector<8x1xf32>
    %cst_8 = arith.constant dense<0xFF800000> : vector<8xf32>
    %10 = vector.multi_reduction <maximumf>, %8, %cst_8 [1] : vector<8x128xf32> to vector<8xf32>
    %11 = vector.shape_cast %10 : vector<8xf32> to vector<8x1xf32>
    %12 = arith.maximumf %9, %11 : vector<8x1xf32>
    %c0_9 = arith.constant 0 : index
    %c0_10 = arith.constant 0 : index
    %13 = vector.load %arg9[%c0_9, %c0_10] : memref<8x1xf32, #tpu.memory_space<vmem>>, vector<8x1xf32>
    %14 = arith.subf %9, %12 : vector<8x1xf32>
    %15 = math.exp %14 : vector<8x1xf32>
    %16 = arith.mulf %13, %15 : vector<8x1xf32>
    %17 = vector.broadcast %12 : vector<8x1xf32> to vector<8x128xf32>
    %18 = arith.subf %8, %17 : vector<8x128xf32>
    %19 = math.exp %18 : vector<8x128xf32>
    %cst_11 = arith.constant dense<0.000000e+00> : vector<8xf32>
    %20 = vector.multi_reduction <add>, %19, %cst_11 [1] : vector<8x128xf32> to vector<8xf32>
    %21 = vector.shape_cast %20 : vector<8xf32> to vector<8x1xf32>
    %22 = arith.addf %16, %21 : vector<8x1xf32>
    %c0_12 = arith.constant 0 : index
    %c0_13 = arith.constant 0 : index
    %23 = vector.load %arg8[%c0_12, %c0_13] : memref<8x1xf32, #tpu.memory_space<vmem>>, vector<8x1xf32>
    tpu.vector_store %arg8[%c0_12, %c0_13], %12 {strides = array<i32>} : memref<8x1xf32, #tpu.memory_space<vmem>>, vector<8x1xf32>,
    %c0_14 = arith.constant 0 : index
    %c0_15 = arith.constant 0 : index
    %24 = vector.load %arg9[%c0_14, %c0_15] : memref<8x1xf32, #tpu.memory_space<vmem>>, vector<8x1xf32>
    tpu.vector_store %arg9[%c0_14, %c0_15], %22 {strides = array<i32>} : memref<8x1xf32, #tpu.memory_space<vmem>>, vector<8x1xf32>,
    %c0_i32_16 = arith.constant 0 : i32
    %25 = arith.cmpi eq, %arg1, %c0_i32_16 : i32
    %26 = arith.extui %25 : i1 to i32
    %c0_i32_17 = arith.constant 0 : i32
    %27 = arith.cmpi ne, %26, %c0_i32_17 : i32
    scf.if %27 {
      %28 = math.log %22 : vector<8x1xf32>
      %29 = arith.addf %12, %28 : vector<8x1xf32>
      %30 = vector.broadcast %29 : vector<8x1xf32> to vector<8x128xf32>
      %31 = arith.subf %8, %30 : vector<8x128xf32>
      %c0_18 = arith.constant 0 : index
      %c0_19 = arith.constant 0 : index
      %32 = vector.load %arg6[%c0_18, %c0_19] : memref<8x128xf32, #tpu.memory_space<vmem>>, vector<8x128xf32>
      tpu.vector_store %arg6[%c0_18, %c0_19], %31 {strides = array<i32>} : memref<8x128xf32, #tpu.memory_space<vmem>>, vector<8x128xf32>,
    } else {
    }
    return
  }
  func.func @transform_0(%arg0: i32, %arg1: i32) -> i32 {
    %c0_i32 = arith.constant 0 : i32
    %c0_i32_0 = arith.constant 0 : i32
    return %c0_i32 : i32
  }
  func.func @transform_1(%arg0: i32, %arg1: i32) -> (i32, i32) {
    %c0_i32 = arith.constant 0 : i32
    %c0_i32_0 = arith.constant 0 : i32
    %c0_i32_1 = arith.constant 0 : i32
    return %c0_i32, %c0_i32_0 : i32, i32
  }
  func.func @transform_2(%arg0: i32, %arg1: i32) -> (i32, i32) {
    %c0_i32 = arith.constant 0 : i32
    %c0_i32_0 = arith.constant 0 : i32
    return %c0_i32, %arg1 : i32, i32
  }
  func.func @transform_3(%arg0: i32, %arg1: i32) -> (i32, i32) {
    %c0_i32 = arith.constant 0 : i32
    %c0_i32_0 = arith.constant 0 : i32
    return %c0_i32, %arg1 : i32, i32
  }
  func.func @transform_4(%arg0: i32, %arg1: i32) -> (i32, i32) {
    %c0_i32 = arith.constant 0 : i32
    %c0_i32_0 = arith.constant 0 : i32
    return %arg0, %c0_i32 : i32, i32
  }
}

</mosaic_0001>

<llo_original>
// kernel: _cbow_core.1
$region0: #{_cbow_core.1}
  #allocation0 [shape = 'u32[]', space=smem, size = 0x4, offset = 0x4, fixed_abs, tag = 'smem constant byte address 0x4 - core index']
  #allocation1 [shape = 'u32[144,128]{1,0:T(1,128)}', space=vmem, size = 0x12000, scoped, tag = 'internal scratch']
  #allocation2 [shape = 'bf16[8,32]{1,0:T(8,128)(2,1)}', space=vmem, size = 0x800, scoped, tag = 'scratch operand']
  #allocation3 [shape = 'f32[8,1]{1,0:T(8,128)}', space=vmem, size = 0x1000, scoped, tag = 'scratch operand']
  #allocation4 [shape = 'f32[8,1]{1,0:T(8,128)}', space=vmem, size = 0x1000, scoped, tag = 'scratch operand']
  #allocation5 [shape = 'f32[1,8,128]{2,1,0:T(8,128)}', space=vmem, size = 0x1000, scoped, tag = 'scratch operand']
  %s0 = inlined_call_operand.vmem [shape: s32[32], index: 0, kind: input, shape index: {}]
  %s1 = inlined_call_operand.vmem [shape: f32[56,32], index: 1, kind: input, shape index: {}]
  %s2 = inlined_call_operand.vmem [shape: bf16[32,128], index: 2, kind: input, shape index: {}]
  %s3 = inlined_call_operand.vmem [shape: f32[1,128], index: 3, kind: input, shape index: {}]
  %s4 = inlined_call_operand.hbm [shape: f32[8,128], index: 4, kind: output, shape index: {}]
  %s5 = sld [smem:[#allocation0]]
  $region38: #{_cbow_core.1} parent=0
    _
  %s7 = ssub.s32 1, %s5
  %s8 = scalar_select 0, %s7, %s5
  $region1: #{_cbow_core.1} parent=0
    #allocation6 [shape = 'u8[512]{0}', space=smem, size = 0x200, scoped, tag = 'input window, operand 0, single buffered']
    #allocation7 [shape = 's32[1]{0}', space=sflag, size = 0x4, scoped, tag = 'scoped memory for _cbow_core.1']
    #allocation8 [shape = 's32[1]{0}', space=sflag, size = 0x4, scoped, tag = 'scoped memory for _cbow_core.1']
    #allocation9 [shape = 'u8[4096]{0}', space=vmem, size = 0x1000, scoped, tag = 'output window, operand 0, single buffered']
    %9 = vsyncpa [#allocation8], 0
    %10 = vsyncpa [#allocation7], 0
    // Predicated region
    $region2: #{_cbow_core.1} parent=1 // pred_check
      _
    $region3: #{_cbow_core.1} parent=1 // pred_check_branch
      %12 = sbr.rel (0) target = $region5
    $region4: #{_cbow_core.1} parent=1 // pred_region
      %s14 = ssub.s32 16, 16
      %15 = vsyncadd [#allocation8], %s14
      %s17 = sshll.u32 %s0, 4
      %s18 = int_to_ptr.vmem [resolvable:$true] %s17
      %20 = dma.vmem_to_smem %s18, 16, [#allocation6], [#allocation8]
    $region5: #{_cbow_core.1} parent=1 // pred_fallthru
      _
    // Predicated region
    $region6: #{_cbow_core.1} parent=1 // pred_check
      _
    $region7: #{_cbow_core.1} parent=1 // pred_check_branch
      %22 = sbr.rel (0) target = $region9
    $region8: #{_cbow_core.1} parent=1 // pred_region
      _
    $region9: #{_cbow_core.1} parent=1 // pred_fallthru
      _
    // Predicated region
    $region10: #{_cbow_core.1} parent=1 // pred_check
      _
    $region11: #{_cbow_core.1} parent=1 // pred_check_branch
      %24 = sbr.rel (0) target = $region13
    $region12: #{_cbow_core.1} parent=1 // pred_region
      _
    $region13: #{_cbow_core.1} parent=1 // pred_fallthru
      _
    // Predicated region
    $region14: #{_cbow_core.1} parent=1 // pred_check
      _
    $region15: #{_cbow_core.1} parent=1 // pred_check_branch
      %26 = sbr.rel (0) target = $region17
    $region16: #{_cbow_core.1} parent=1 // pred_region
      _
    $region17: #{_cbow_core.1} parent=1 // pred_fallthru
      _
    // Predicated region
    $region18: #{_cbow_core.1} parent=1 // pred_check
      _
    $region19: #{_cbow_core.1} parent=1 // pred_check_branch
      %28 = sbr.rel (0) target = $region21
    $region20: #{_cbow_core.1} parent=1 // pred_region
      %29 = dma.done [#allocation8], 16
    $region21: #{_cbow_core.1} parent=1 // pred_fallthru
      _
    %30 = sfence
    %p32 = scmp.eq.s32.totalorder 0, 0
    // Predicated region
    $region22: #{_cbow_core.1} parent=1 // pred_check
      %p33 = pneg %p32
    $region23: #{_cbow_core.1} parent=1 // pred_check_branch
      %35 = sbr.rel (%p33) target = $region25
    $region24: #{_cbow_core.1} parent=1 // pred_region
      %v36 = vld [vmem:[%s1] sm:$0xff]
      %v37 = vld [vmem:[%s1 + $0x8] sm:$0xff]
      %v38 = vld [vmem:[%s1 + $0x10] sm:$0xff]
      %v39 = vld [vmem:[%s1 + $0x18] sm:$0xff]
      %v40 = vld [vmem:[%s1 + $0x20] sm:$0xff]
      %v41 = vld [vmem:[%s1 + $0x28] sm:$0xff]
      %v42 = vld [vmem:[%s1 + $0x30] sm:$0xff]
      %v43 = vlaneseq
      %v44 = vand.u32 %v43, 127
      %s45 = smul.u32 0, 32
      %s46 = sld [smem:[#allocation6 + %s45]]
      %v47 = vstv %s46
      %vm48 = vcmp.eq.s32.totalorder %v44, %v47
      %v49 = vsel %vm48, 1, 0
      %v50 = vcvt.s32.f32 %v49
      %s51 = sadd.s32 %s45, 1
      %s52 = sld [smem:[#allocation6 + %s51]]
      %v53 = vstv %s52
      %vm54 = vcmp.eq.s32.totalorder %v44, %v53
      %v55 = vsel %vm54, 1, 0
      %v56 = vcvt.s32.f32 %v55
      %v57 = vadd.f32 %v50, %v56
      %s58 = sadd.s32 %s45, 2
      %s59 = sld [smem:[#allocation6 + %s58]]
      %v60 = vstv %s59
      %vm61 = vcmp.eq.s32.totalorder %v44, %v60
      %v62 = vsel %vm61, 1, 0
      %v63 = vcvt.s32.f32 %v62
      %v64 = vadd.f32 %v57, %v63
      %s65 = sadd.s32 %s45, 3
      %s66 = sld [smem:[#allocation6 + %s65]]
      %v67 = vstv %s66
      %vm68 = vcmp.eq.s32.totalorder %v44, %v67
      %v69 = vsel %vm68, 1, 0
      %v70 = vcvt.s32.f32 %v69
      %v71 = vadd.f32 %v64, %v70
      %s72 = smul.u32 0, 8
      %s73 = sadd.s32 %s72, 1
      %s74 = smul.u32 %s73, 4
      %s75 = sld [smem:[#allocation6 + %s74]]
      %v76 = vstv %s75
      %vm77 = vcmp.eq.s32.totalorder %v44, %v76
      %v78 = vsel %vm77, 1, 0
      %v79 = vcvt.s32.f32 %v78
      %s80 = sadd.s32 %s74, 1
      %s81 = sld [smem:[#allocation6 + %s80]]
      %v82 = vstv %s81
      %vm83 = vcmp.eq.s32.totalorder %v44, %v82
      %v84 = vsel %vm83, 1, 0
      %v85 = vcvt.s32.f32 %v84
      %v86 = vadd.f32 %v79, %v85
      %s87 = sadd.s32 %s74, 2
      %s88 = sld [smem:[#allocation6 + %s87]]
      %v89 = vstv %s88
      %vm90 = vcmp.eq.s32.totalorder %v44, %v89
      %v91 = vsel %vm90, 1, 0
      %v92 = vcvt.s32.f32 %v91
      %v93 = vadd.f32 %v86, %v92
      %s94 = sadd.s32 %s74, 3
      %s95 = sld [smem:[#allocation6 + %s94]]
      %v96 = vstv %s95
      %vm97 = vcmp.eq.s32.totalorder %v44, %v96
      %v98 = vsel %vm97, 1, 0
      %v99 = vcvt.s32.f32 %v98
      %v100 = vadd.f32 %v93, %v99
      %s101 = sadd.s32 %s72, 2
      %s102 = smul.u32 %s101, 4
      %s103 = sld [smem:[#allocation6 + %s102]]
      %v104 = vstv %s103
      %vm105 = vcmp.eq.s32.totalorder %v44, %v104
      %v106 = vsel %vm105, 1, 0
      %v107 = vcvt.s32.f32 %v106
      %s108 = sadd.s32 %s102, 1
      %s109 = sld [smem:[#allocation6 + %s108]]
      %v110 = vstv %s109
      %vm111 = vcmp.eq.s32.totalorder %v44, %v110
      %v112 = vsel %vm111, 1, 0
      %v113 = vcvt.s32.f32 %v112
      %v114 = vadd.f32 %v107, %v113
      %s115 = sadd.s32 %s102, 2
      %s116 = sld [smem:[#allocation6 + %s115]]
      %v117 = vstv %s116
      %vm118 = vcmp.eq.s32.totalorder %v44, %v117
      %v119 = vsel %vm118, 1, 0
      %v120 = vcvt.s32.f32 %v119
      %v121 = vadd.f32 %v114, %v120
      %s122 = sadd.s32 %s102, 3
      %s123 = sld [smem:[#allocation6 + %s122]]
      %v124 = vstv %s123
      %vm125 = vcmp.eq.s32.totalorder %v44, %v124
      %v126 = vsel %vm125, 1, 0
      %v127 = vcvt.s32.f32 %v126
      %v128 = vadd.f32 %v121, %v127
      %s129 = sadd.s32 %s72, 3
      %s130 = smul.u32 %s129, 4
      %s131 = sld [smem:[#allocation6 + %s130]]
      %v132 = vstv %s131
      %vm133 = vcmp.eq.s32.totalorder %v44, %v132
      %v134 = vsel %vm133, 1, 0
      %v135 = vcvt.s32.f32 %v134
      %s136 = sadd.s32 %s130, 1
      %s137 = sld [smem:[#allocation6 + %s136]]
      %v138 = vstv %s137
      %vm139 = vcmp.eq.s32.totalorder %v44, %v138
      %v140 = vsel %vm139, 1, 0
      %v141 = vcvt.s32.f32 %v140
      %v142 = vadd.f32 %v135, %v141
      %s143 = sadd.s32 %s130, 2
      %s144 = sld [smem:[#allocation6 + %s143]]
      %v145 = vstv %s144
      %vm146 = vcmp.eq.s32.totalorder %v44, %v145
      %v147 = vsel %vm146, 1, 0
      %v148 = vcvt.s32.f32 %v147
      %v149 = vadd.f32 %v142, %v148
      %s150 = sadd.s32 %s130, 3
      %s151 = sld [smem:[#allocation6 + %s150]]
      %v152 = vstv %s151
      %vm153 = vcmp.eq.s32.totalorder %v44, %v152
      %v154 = vsel %vm153, 1, 0
      %v155 = vcvt.s32.f32 %v154
      %v156 = vadd.f32 %v149, %v155
      %s157 = sadd.s32 %s72, 4
      %s158 = smul.u32 %s157, 4
      %s159 = sld [smem:[#allocation6 + %s158]]
      %v160 = vstv %s159
      %vm161 = vcmp.eq.s32.totalorder %v44, %v160
      %v162 = vsel %vm161, 1, 0
      %v163 = vcvt.s32.f32 %v162
      %s164 = sadd.s32 %s158, 1
      %s165 = sld [smem:[#allocation6 + %s164]]
      %v166 = vstv %s165
      %vm167 = vcmp.eq.s32.totalorder %v44, %v166
      %v168 = vsel %vm167, 1, 0
      %v169 = vcvt.s32.f32 %v168
      %v170 = vadd.f32 %v163, %v169
      %s171 = sadd.s32 %s158, 2
      %s172 = sld [smem:[#allocation6 + %s171]]
      %v173 = vstv %s172
      %vm174 = vcmp.eq.s32.totalorder %v44, %v173
      %v175 = vsel %vm174, 1, 0
      %v176 = vcvt.s32.f32 %v175
      %v177 = vadd.f32 %v170, %v176
      %s178 = sadd.s32 %s158, 3
      %s179 = sld [smem:[#allocation6 + %s178]]
      %v180 = vstv %s179
      %vm181 = vcmp.eq.s32.totalorder %v44, %v180
      %v182 = vsel %vm181, 1, 0
      %v183 = vcvt.s32.f32 %v182
      %v184 = vadd.f32 %v177, %v183
      %s185 = sadd.s32 %s72, 5
      %s186 = smul.u32 %s185, 4
      %s187 = sld [smem:[#allocation6 + %s186]]
      %v188 = vstv %s187
      %vm189 = vcmp.eq.s32.totalorder %v44, %v188
      %v190 = vsel %vm189, 1, 0
      %v191 = vcvt.s32.f32 %v190
      %s192 = sadd.s32 %s186, 1
      %s193 = sld [smem:[#allocation6 + %s192]]
      %v194 = vstv %s193
      %vm195 = vcmp.eq.s32.totalorder %v44, %v194
      %v196 = vsel %vm195, 1, 0
      %v197 = vcvt.s32.f32 %v196
      %v198 = vadd.f32 %v191, %v197
      %s199 = sadd.s32 %s186, 2
      %s200 = sld [smem:[#allocation6 + %s199]]
      %v201 = vstv %s200
      %vm202 = vcmp.eq.s32.totalorder %v44, %v201
      %v203 = vsel %vm202, 1, 0
      %v204 = vcvt.s32.f32 %v203
      %v205 = vadd.f32 %v198, %v204
      %s206 = sadd.s32 %s186, 3
      %s207 = sld [smem:[#allocation6 + %s206]]
      %v208 = vstv %s207
      %vm209 = vcmp.eq.s32.totalorder %v44, %v208
      %v210 = vsel %vm209, 1, 0
      %v211 = vcvt.s32.f32 %v210
      %v212 = vadd.f32 %v205, %v211
      %s213 = sadd.s32 %s72, 6
      %s214 = smul.u32 %s213, 4
      %s215 = sld [smem:[#allocation6 + %s214]]
      %v216 = vstv %s215
      %vm217 = vcmp.eq.s32.totalorder %v44, %v216
      %v218 = vsel %vm217, 1, 0
      %v219 = vcvt.s32.f32 %v218
      %s220 = sadd.s32 %s214, 1
      %s221 = sld [smem:[#allocation6 + %s220]]
      %v222 = vstv %s221
      %vm223 = vcmp.eq.s32.totalorder %v44, %v222
      %v224 = vsel %vm223, 1, 0
      %v225 = vcvt.s32.f32 %v224
      %v226 = vadd.f32 %v219, %v225
      %s227 = sadd.s32 %s214, 2
      %s228 = sld [smem:[#allocation6 + %s227]]
      %v229 = vstv %s228
      %vm230 = vcmp.eq.s32.totalorder %v44, %v229
      %v231 = vsel %vm230, 1, 0
      %v232 = vcvt.s32.f32 %v231
      %v233 = vadd.f32 %v226, %v232
      %s234 = sadd.s32 %s214, 3
      %s235 = sld [smem:[#allocation6 + %s234]]
      %v236 = vstv %s235
      %vm237 = vcmp.eq.s32.totalorder %v44, %v236
      %v238 = vsel %vm237, 1, 0
      %v239 = vcvt.s32.f32 %v238
      %v240 = vadd.f32 %v233, %v239
      %s241 = sadd.s32 %s72, 7
      %s242 = smul.u32 %s241, 4
      %s243 = sld [smem:[#allocation6 + %s242]]
      %v244 = vstv %s243
      %vm245 = vcmp.eq.s32.totalorder %v44, %v244
      %v246 = vsel %vm245, 1, 0
      %v247 = vcvt.s32.f32 %v246
      %s248 = sadd.s32 %s242, 1
      %s249 = sld [smem:[#allocation6 + %s248]]
      %v250 = vstv %s249
      %vm251 = vcmp.eq.s32.totalorder %v44, %v250
      %v252 = vsel %vm251, 1, 0
      %v253 = vcvt.s32.f32 %v252
      %v254 = vadd.f32 %v247, %v253
      %s255 = sadd.s32 %s242, 2
      %s256 = sld [smem:[#allocation6 + %s255]]
      %v257 = vstv %s256
      %vm258 = vcmp.eq.s32.totalorder %v44, %v257
      %v259 = vsel %vm258, 1, 0
      %v260 = vcvt.s32.f32 %v259
      %v261 = vadd.f32 %v254, %v260
      %s262 = sadd.s32 %s242, 3
      %s263 = sld [smem:[#allocation6 + %s262]]
      %v264 = vstv %s263
      %vm265 = vcmp.eq.s32.totalorder %v44, %v264
      %v266 = vsel %vm265, 1, 0
      %v267 = vcvt.s32.f32 %v266
      %v268 = vadd.f32 %v261, %v267
      %vm269 = vcmask 1040384
      %v270 = vsel %vm269, %v71, %v100
      %vm271 = vcmask 1041408
      %v272 = vsel %vm271, %v270, %v128
      %vm273 = vcmask 1042432
      %v274 = vsel %vm273, %v272, %v156
      %vm275 = vcmask 1043456
      %v276 = vsel %vm275, %v274, %v184
      %vm277 = vcmask 1044480
      %v278 = vsel %vm277, %v276, %v212
      %vm279 = vcmask 1045504
      %v280 = vsel %vm279, %v278, %v240
      %vm281 = vcmask 1046528
      %v282 = vsel %vm281, %v280, %v268
      %vm283 = vcmask 457728
      %v285 = vsel %vm283, %v282, 0
      %287 = vmatprep.subr.mxu0 0.0
      %288 = vmatpush1.msra.mxu0 0.0
      %289 = vmatprep.subr.mxu0 0.0
      %290 = vmatpush1.msra.mxu0 0.0
      %291 = vmatprep.subr.mxu0 0.0
      %292 = vmatpush1.msra.mxu0 0.0
      %293 = vmatprep.subr.mxu0 0.0
      %294 = vmatpush1.msra.mxu0 0.0
      %295 = vmatprep.subr.mxu0 0.0
      %296 = vmatpush1.msra.mxu0 0.0
      %297 = vmatprep.subr.mxu0 0.0
      %298 = vmatpush1.msra.mxu0 0.0
      %299 = vmatprep.subr.mxu0 0.0
      %300 = vmatpush1.msra.mxu0 0.0
      %301 = vmatprep.subr.mxu0 0.0
      %302 = vmatpush1.msra.mxu0 0.0
      %303 = vmatprep.subr.mxu0 0.0
      %304 = vmatpush1.msra.mxu0 0.0
      %305 = vmatprep.subr.mxu0 0.0
      %306 = vmatpush1.msra.mxu0 %v42
      %307 = vmatprep.subr.mxu0 0.0
      %308 = vmatpush1.msra.mxu0 %v41
      %309 = vmatprep.subr.mxu0 0.0
      %310 = vmatpush1.msra.mxu0 %v40
      %311 = vmatprep.subr.mxu0 0.0
      %312 = vmatpush1.msra.mxu0 %v39
      %313 = vmatprep.subr.mxu0 0.0
      %314 = vmatpush1.msra.mxu0 %v38
      %315 = vmatprep.subr.mxu0 0.0
      %316 = vmatpush1.msra.mxu0 %v37
      %317 = vmatprep.subr.mxu0 0.0
      %318 = vmatpush1.msra.mxu0 %v36
      %319 = vmatprep.subr.mxu0 0.0
      %320 = vmatpush2.msra.mxu0 0.0
      %321 = vmatprep.subr.mxu0 0.0
      %322 = vmatpush2.msra.mxu0 0.0
      %323 = vmatprep.subr.mxu0 0.0
      %324 = vmatpush2.msra.mxu0 0.0
      %325 = vmatprep.subr.mxu0 0.0
      %326 = vmatpush2.msra.mxu0 0.0
      %327 = vmatprep.subr.mxu0 0.0
      %328 = vmatpush2.msra.mxu0 0.0
      %329 = vmatprep.subr.mxu0 0.0
      %330 = vmatpush2.msra.mxu0 0.0
      %331 = vmatprep.subr.mxu0 0.0
      %332 = vmatpush2.msra.mxu0 0.0
      %333 = vmatprep.subr.mxu0 0.0
      %334 = vmatpush2.msra.mxu0 0.0
      %335 = vmatprep.subr.mxu0 0.0
      %336 = vmatpush2.msra.mxu0 0.0
      %337 = vmatprep.subr.mxu0 0.0
      %338 = vmatpush2.msra.mxu0 0.0
      %339 = vmatprep.subr.mxu0 0.0
      %340 = vmatpush2.msra.mxu0 0.0
      %341 = vmatprep.subr.mxu0 0.0
      %342 = vmatpush2.msra.mxu0 0.0
      %343 = vmatprep.subr.mxu0 0.0
      %344 = vmatpush2.msra.mxu0 0.0
      %345 = vmatprep.subr.mxu0 0.0
      %346 = vmatpush2.msra.mxu0 0.0
      %347 = vmatprep.subr.mxu0 0.0
      %348 = vmatpush2.msra.mxu0 0.0
      %349 = vmatprep.subr.mxu0 0.0
      %350 = vmatpush2.msra.mxu0 0.0
      %351 = vmatprep.mubr.f32.mxu0 0.0
      %352 = vmatmul.mubr.f32.gmra.mxu0 %v285
      %v353 = vpop.f32.mrf.mxu0
      %v354 = vadd.f32 0.0, %v353
      %v355 = vpop.f32.mrf.mxu0
      %356 = vdwg.mxu0
      %v357 = vpack.c.bf16 %v354, %v354
      %vm358 = vcmask 257024
      %359 = vst.msk [vmem:[#allocation2] sm:$0xf] %vm358, %v357
      %vm360 = vcmask 7168
      %361 = vst.msk [vmem:[#allocation3] sm:$0xff] %vm360, -3.4028235e+38
      %362 = vst.msk [vmem:[#allocation4] sm:$0xff] %vm360, 0.0
    $region25: #{_cbow_core.1} parent=1 // pred_fallthru
      _
    %v363 = vld [vmem:[#allocation2] sm:$0xf]
    %v364 = vld [vmem:[%s2] sm:$0xf]
    %v365 = vld [vmem:[%s2 + $0x4] sm:$0xf]
    %v366 = vld [vmem:[%s2 + $0x8] sm:$0xf]
    %v367 = vld [vmem:[%s2 + $0xc] sm:$0xf]
    %v368 = vld [vmem:[%s3] sm:$0x1]
    %v370 = vlaneseq
    %v371 = vshrl.u32 %v370, 7
    %v372 = vsub.s32 0, %v371
    %v373 = vrot.slane %v368, %v372
    %v379 = vunpack.c.l.b16 %v364
    %v380 = vunpack.c.l.b16 %v365
    %v381 = vunpack.c.l.b16 %v366
    %v382 = vunpack.c.l.b16 %v367
    %v383 = vpack.c.b16 %v380, %v379
    %v384 = vpack.c.b16 %v382, %v381
    %vm387 = vcmask 261120
    %v389 = vsel %vm387, %v363, 0
    %391 = vmatprep.subr.bf16.mxu0 0
    %392 = vmatpush1.bf16.msra.mxu0 0
    %393 = vmatprep.subr.bf16.mxu0 0
    %394 = vmatpush1.bf16.msra.mxu0 0
    %395 = vmatprep.subr.bf16.mxu0 0
    %396 = vmatpush1.bf16.msra.mxu0 0
    %397 = vmatprep.subr.bf16.mxu0 0
    %398 = vmatpush1.bf16.msra.mxu0 0
    %399 = vmatprep.subr.bf16.mxu0 0
    %400 = vmatpush1.bf16.msra.mxu0 0
    %401 = vmatprep.subr.bf16.mxu0 0
    %402 = vmatpush1.bf16.msra.mxu0 0
    %403 = vmatprep.subr.bf16.mxu0 0
    %404 = vmatpush1.bf16.msra.mxu0 %v384
    %405 = vmatprep.subr.bf16.mxu0 0
    %406 = vmatpush1.bf16.msra.mxu0 %v383
    %407 = vmatprep.subr.bf16.mxu0 0
    %408 = vmatpush2.bf16.msra.mxu0 0
    %409 = vmatprep.subr.bf16.mxu0 0
    %410 = vmatpush2.bf16.msra.mxu0 0
    %411 = vmatprep.subr.bf16.mxu0 0
    %412 = vmatpush2.bf16.msra.mxu0 0
    %413 = vmatprep.subr.bf16.mxu0 0
    %414 = vmatpush2.bf16.msra.mxu0 0
    %415 = vmatprep.subr.bf16.mxu0 0
    %416 = vmatpush2.bf16.msra.mxu0 0
    %417 = vmatprep.subr.bf16.mxu0 0
    %418 = vmatpush2.bf16.msra.mxu0 0
    %419 = vmatprep.subr.bf16.mxu0 0
    %420 = vmatpush2.bf16.msra.mxu0 0
    %421 = vmatprep.subr.bf16.mxu0 0
    %422 = vmatpush2.bf16.msra.mxu0 0
    %423 = vmatprep.mubr.bf16.mxu0 0
    %424 = vmatmul.mubr.bf16.gmra.mxu0 %v389
    %v425 = vpop.f32.mrf.mxu0
    %v426 = vadd.f32 %v373, %v425
    %v427 = vpop.f32.mrf.mxu0
    %v428 = vpop.f32.mrf.mxu0
    %v429 = vpop.f32.mrf.mxu0
    %430 = vdwg.mxu0
    %v431 = vld [vmem:[#allocation3] sm:$0xff]
    %432 = vmax.xlane.f32.xlu0 %v426
    %v433 = vpop.xlane.xlu0 %432
    %v434 = vmax.f32 %v431, %v433
    %v435 = vld [vmem:[#allocation4] sm:$0xff]
    %v436 = vsub.f32 %v431, %v434
    %v437 = vmul.f32 %v436, 1.442695
    %v438 = vpow.pop %v437
    %v439 = vmul.f32 %v435, %v438
    %441 = vset.pattern.permute.xlu0 0
    %442 = vperm.xlu0 %441, %v434
    %v443 = vpop.permute.xlu0 %442
    %v445 = vsub.f32 %v426, %v443
    %v446 = vmul.f32 %v445, 1.442695
    %v447 = vpow.pop %v446
    %448 = vadd.xlane.f32.xlu0 %v447
    %v449 = vpop.xlane.xlu0 %448
    %v450 = vadd.f32 %v439, %v449
    %vm451 = vcmask 7168
    %452 = vst.msk [vmem:[#allocation3] sm:$0xff] %vm451, %v434
    %453 = vst.msk [vmem:[#allocation4] sm:$0xff] %vm451, %v450
    // Predicated region
    $region26: #{_cbow_core.1} parent=1 // pred_check
      %p454 = pneg %p32
    $region27: #{_cbow_core.1} parent=1 // pred_check_branch
      %456 = sbr.rel (%p454) target = $region29
    $region28: #{_cbow_core.1} parent=1 // pred_region
      %v457 = vlog2.pop %v450
      %v458 = vmul.f32 %v457, 0.6931472
      %v459 = vadd.f32 %v434, %v458
      %461 = vset.pattern.permute.xlu0 0
      %462 = vperm.xlu0 %461, %v459
      %v463 = vpop.permute.xlu0 %462
      %v465 = vsub.f32 %v426, %v463
      %466 = vst [vmem:[#allocation9] sm:$0xff] %v465
    $region29: #{_cbow_core.1} parent=1 // pred_fallthru
      _
    // Predicated region
    $region30: #{_cbow_core.1} parent=1 // pred_check
      _
    $region31: #{_cbow_core.1} parent=1 // pred_check_branch
      %468 = sbr.rel (0) target = $region33
    $region32: #{_cbow_core.1} parent=1 // pred_region
      %s470 = ssub.s32 128, 128
      %471 = vsyncadd [#allocation7], %s470
      %s473 = sshll.u32 [#allocation9], 4
      %s474 = int_to_ptr.vmem [resolvable:$true] %s473
      %476 = dma.vmem_to_hbm [thread:$0]  %s474, 128, %s4, [#allocation7]
    $region33: #{_cbow_core.1} parent=1 // pred_fallthru
      _
    // Predicated region
    $region34: #{_cbow_core.1} parent=1 // pred_check
      _
    $region35: #{_cbow_core.1} parent=1 // pred_check_branch
      %478 = sbr.rel (0) target = $region37
    $region36: #{_cbow_core.1} parent=1 // pred_region
      %479 = dma.done [#allocation7], 128
    $region37: #{_cbow_core.1} parent=1 // pred_fallthru
      _
    %480 = vsyncpa [#allocation7], 1
    %481 = vsyncpa [#allocation8], 1

</llo_original>
